<compile_context>
chip_gen: v6e
topology: v6e:2x2x1
jax: 0.10.0
libtpu: 0.0.40
codegen_flags: <defaults>
</compile_context>

<pallas_src>
import jax
import jax.numpy as jnp
from jax.experimental import pallas as pl
from jax.experimental.pallas import tpu as pltpu

KSIZE = 7                      # conv kernel size
PAD = 3                        # conv padding
VMEM_LIMIT = 48 << 20          # above 16/32 MiB scoped defaults, below v7x physical
MAX_COST_BLOCK_BYTES = 4 << 20 # per-buffer budget for the (D, TH*W) cost block


def _largest_divisor_at_most(n, cap):
    for c in range(min(n, cap), 0, -1):
        if n % c == 0:
            return c
    return 1


def _choose_tile_h(H, W, D, itemsize):
    """H tile: block under VMEM budget, lane-dense (TH*W % 128 == 0), >=2 tiles."""
    divs = [t for t in range(1, H + 1) if H % t == 0]
    lane_ok = [t for t in divs if (t * W) % 128 == 0 or t == H]
    ok = [t for t in lane_ok if D * t * W * itemsize <= MAX_COST_BLOCK_BYTES]
    if not ok:
        return min(lane_ok)            # huge shape: smallest legal tile
    multi = [t for t in ok if t < H]   # prefer >=2 H tiles (megacore when B==1)
    return max(multi) if multi else max(ok)


def _make_pool_kernel(C, D, THW, ch_chunk, n_chunks, unroll):
    inv = 1.0 / float(C + D)

    def pool_kernel(img_ref, cost_ref, pooled_ref):
        # img_ref: (C, THW)   cost_ref: (D, THW)   pooled_ref: (2, THW) [avg; max]
        img = img_ref[...].astype(jnp.float32)

        def body(i, carry):
            s, m = carry
            start = pl.multiple_of(i * ch_chunk, ch_chunk)
            blk = cost_ref[pl.ds(start, ch_chunk), :].astype(jnp.float32)
            # pure VPU add/max per chunk; cross-sublane reduce deferred to the end
            return s + blk, jnp.maximum(m, blk)

        s0 = jnp.zeros((ch_chunk, THW), jnp.float32)
        m0 = jnp.full((ch_chunk, THW), -jnp.inf, jnp.float32)
        s, m = jax.lax.fori_loop(0, n_chunks, body, (s0, m0), unroll=unroll)

        ssum = jnp.sum(s, axis=0, keepdims=True) + jnp.sum(img, axis=0, keepdims=True)
        mmax = jnp.maximum(jnp.max(m, axis=0, keepdims=True),
                           jnp.max(img, axis=0, keepdims=True))
        pooled_ref[0:1, :] = ssum * inv
        pooled_ref[1:2, :] = mmax

    return pool_kernel


def _make_conv_apply_kernel(W, TH, THW, apply_chunk, n_apply, apply_unroll):
    WIN = (TH + 2 * PAD) * W          # rows [tile_start-3, tile_start+TH+3) flat

    def conv_apply_kernel(win_ref, cost_ref, w_ref, out_ref):
        # win_ref : (2, WIN + 2*PAD)  f32 pooled window (row halo + lane slack)
        # cost_ref: (D, THW)          this tile's cost rows
        # w_ref   : (98,) SMEM        flattened conv weight [c, kh, kw]
        # out_ref : (D, THW)
        col = jax.lax.broadcasted_iota(jnp.int32, (1, THW), 1) % W

        attn = jnp.zeros((1, THW), jnp.float32)
        for kw in range(KSIZE):
            # One kw-shifted copy of the window (7 small unaligned slices per
            # tile instead of 98); each kh tap below is a W-aligned slice.
            sw = win_ref[:, kw:kw + WIN]                    # (2, WIN), f32
            part = jnp.zeros((1, THW), jnp.float32)
            for c in range(2):
                for kh in range(KSIZE):
                    wval = w_ref[c * KSIZE * KSIZE + kh * KSIZE + kw]
                    part = part + wval * sw[c:c + 1, kh * W:kh * W + THW]
            # width-direction zero padding: zero columns where x + kw - PAD is
            # outside [0, W).  Applied after summing over c/kh so any
            # neighbour-row values read at invalid columns never leak in.
            xk = col + (kw - PAD)
            attn = attn + jnp.where((xk >= 0) & (xk < W), part, 0.0)

        # NOTE: attn is cast once to the cost dtype; for bf16 inputs this
        # rounds ~1 ulp earlier than a pure-f32 reference (use a bf16-sized
        # tolerance there).  On v5e keeping the multiply in f32 avoids bf16
        # VPU emulation; on v6e/v7x the native-dtype multiply halves traffic.
        attn = jax.nn.sigmoid(attn).astype(out_ref.dtype)   # (1, THW)
        attn_b = jnp.broadcast_to(attn, (apply_chunk, THW)) # hoisted broadcast

        def apply_body(i, _):
            start = pl.multiple_of(i * apply_chunk, apply_chunk)
            sl = pl.ds(start, apply_chunk)
            out_ref[sl, :] = cost_ref[sl, :] * attn_b
            return 0

        jax.lax.fori_loop(0, n_apply, apply_body, 0, unroll=apply_unroll)

    return conv_apply_kernel


def spatial_attention(img_features, cost_volume, conv_weight):
    """img_features: (B,C,H,W); cost_volume: (B,D,H,W); conv_weight: (1,2,7,7)."""
    B, C, H, W = img_features.shape
    D = cost_volume.shape[1]
    HW = H * W
    out_dtype = cost_volume.dtype
    itemsize = jnp.dtype(out_dtype).itemsize

    TH = _choose_tile_h(H, W, D, itemsize)
    n_h = H // TH
    THW = TH * W
    WIN = (TH + 2 * PAD) * W
    WINP = WIN + 2 * PAD

    ch_chunk = _largest_divisor_at_most(D, 8)
    n_chunks = D // ch_chunk
    reduce_unroll = n_chunks <= 16

    apply_chunk = _largest_divisor_at_most(D, 16)
    n_apply = D // apply_chunk
    apply_unroll = n_apply <= 16

    # Lane-dense views (contiguous trailing dims -> free reshape).
    img2 = img_features.reshape(B, C, HW)
    cost2 = cost_volume.reshape(B, D, HW)
    w_flat = conv_weight.reshape(-1).astype(jnp.float32)   # (2*7*7,) = (98,)

    # ---------------- pass 1: channel mean / max over concat([img, cost]) ----
    pool_kernel = _make_pool_kernel(C, D, THW, ch_chunk, n_chunks, reduce_unroll)
    pool_cost = pl.CostEstimate(
        flops=int(2 * B * HW * (C + D)),
        transcendentals=0,
        bytes_accessed=int(B * HW * ((C + D) * itemsize + 2 * 4)))
    pooled = pl.pallas_call(
        pool_kernel,
        out_shape=jax.ShapeDtypeStruct((B, 2, HW), jnp.float32),
        grid_spec=pltpu.PrefetchScalarGridSpec(
            num_scalar_prefetch=0,
            grid=(B, n_h),
            in_specs=[
                pl.BlockSpec((None, C, THW), lambda b, h: (b, 0, h)),
                pl.BlockSpec((None, D, THW), lambda b, h: (b, 0, h)),
            ],
            out_specs=pl.BlockSpec((None, 2, THW), lambda b, h: (b, 0, h)),
        ),
        compiler_params=pltpu.CompilerParams(
            dimension_semantics=("parallel", "parallel"),
            vmem_limit_bytes=VMEM_LIMIT),
        cost_estimate=pool_cost,
    )(img2, cost2)

    # ---- tiny wrapper-side halo prep (2 x H x W f32, plain XLA ops) ---------
    # Zero-pad 3 rows top/bottom, flatten, add +/-3 lane slack for the kw
    # shifts, and gather one (2, WINP) window per H tile so every in-kernel
    # slice offset is static.
    ppad = jnp.pad(pooled.reshape(B, 2, H, W), ((0, 0), (0, 0), (PAD, PAD), (0, 0)))
    ppad = ppad.reshape(B, 2, (H + 2 * PAD) * W)
    ppad = jnp.pad(ppad, ((0, 0), (0, 0), (PAD, PAD)))
    gather_idx = (jnp.arange(n_h) * THW)[:, None] + jnp.arange(WINP)[None, :]
    windows = jnp.take(ppad, gather_idx, axis=2)             # (B, 2, n_h, WINP)
    windows = jnp.transpose(windows, (0, 2, 1, 3))           # (B, n_h, 2, WINP)

    # ---------------- pass 2: 7x7 conv + sigmoid + cost * attn ---------------
    conv_kernel = _make_conv_apply_kernel(W, TH, THW, apply_chunk, n_apply,
                                          apply_unroll)
    conv_cost = pl.CostEstimate(
        flops=int(B * HW * (4 * KSIZE * KSIZE + D)),
        transcendentals=int(B * HW),
        bytes_accessed=int(2 * B * HW * D * itemsize + B * n_h * 2 * WINP * 4))
    out = pl.pallas_call(
        conv_kernel,
        out_shape=jax.ShapeDtypeStruct((B, D, HW), out_dtype),
        grid_spec=pltpu.PrefetchScalarGridSpec(
            num_scalar_prefetch=0,
            grid=(B, n_h),
            in_specs=[
                pl.BlockSpec((None, None, 2, WINP), lambda b, h: (b, h, 0, 0)),
                pl.BlockSpec((None, D, THW), lambda b, h: (b, 0, h)),
                pl.BlockSpec(memory_space=pltpu.MemorySpace.SMEM),
            ],
            out_specs=pl.BlockSpec((None, D, THW), lambda b, h: (b, 0, h)),
        ),
        compiler_params=pltpu.CompilerParams(
            dimension_semantics=("parallel", "parallel"),
            vmem_limit_bytes=VMEM_LIMIT),
        cost_estimate=conv_cost,
    )(windows, cost2, w_flat)

    return out.reshape(B, D, H, W)


def ref_forward(img_features, cost_volume, conv_weight):
    """Pure-JAX reference mirroring the PyTorch forward."""
    combined = jnp.concatenate([img_features, cost_volume], axis=1)
    avg = jnp.mean(combined, axis=1, keepdims=True)
    mx = jnp.max(combined, axis=1, keepdims=True)
    pooled = jnp.concatenate([avg, mx], axis=1)              # (B, 2, H, W)
    attn = jax.lax.conv_general_dilated(
        pooled, conv_weight, window_strides=(1, 1),
        padding=[(PAD, PAD), (PAD, PAD)],
        dimension_numbers=("NCHW", "OIHW", "NCHW"))
    attn = jax.nn.sigmoid(attn)
    return cost_volume * attn


if __name__ == "__main__":
    key = jax.random.PRNGKey(0)
    k_img, k_cost, k_w = jax.random.split(key, 3)

    B, C, D, H, W = 2, 4, 128, 16, 16   # img_channels=4, cost_channels=128
    img = jax.random.uniform(k_img, (B, C, H, W), jnp.float32)
    cost = jax.random.uniform(k_cost, (B, D, H, W), jnp.float32)
    # nn.Conv2d(2, 1, kernel_size=7, padding=3, bias=False) weight: (1, 2, 7, 7)
    weight = jax.random.normal(k_w, (1, 2, KSIZE, KSIZE), jnp.float32) * 0.1

    out = spatial_attention(img, cost, weight)
    out = jax.block_until_ready(out)

    ref = ref_forward(img, cost, weight)
    max_err = float(jnp.max(jnp.abs(out - ref)))
    assert out.shape == (B, D, H, W)
    assert jnp.allclose(out, ref, atol=1e-5, rtol=1e-5), f"max abs err {max_err}"

    print("KERNEL_OK")
</pallas_src>

<mosaic_0001>
module attributes {stable_mosaic.version = 11 : i64} {
  func.func @pool_kernel(%arg0: i32, %arg1: i32, %arg2: memref<1x4x128xf32, #tpu.memory_space<vmem>>, %arg3: memref<1x128x128xf32, #tpu.memory_space<vmem>>, %arg4: memref<1x2x128xf32, #tpu.memory_space<vmem>>) attributes {dimension_semantics = [#tpu.dimension_semantics<parallel>, #tpu.dimension_semantics<parallel>], iteration_bounds = array<i64: 2, 2>, scalar_prefetch = 0 : i64, scratch_operands = 0 : i64, tpu.core_type = #tpu.core_type<tc>, window_params = [{transform_indices = @transform_0, window_bounds = array<i64: 1, 4, 128>}, {transform_indices = @transform_1, window_bounds = array<i64: 1, 128, 128>}, {transform_indices = @transform_2, window_bounds = array<i64: 1, 2, 128>}]} {
    %c0 = arith.constant 0 : index
    %c0_0 = arith.constant 0 : index
    %c0_1 = arith.constant 0 : index
    %0 = vector.load %arg2[%c0, %c0_0, %c0_1] : memref<1x4x128xf32, #tpu.memory_space<vmem>>, vector<1x4x128xf32>
    %1 = vector.shape_cast %0 : vector<1x4x128xf32> to vector<4x128xf32>
    %cst = arith.constant 0.000000e+00 : f32
    %2 = vector.broadcast %cst : f32 to vector<8x128xf32>
    %cst_2 = arith.constant 0xFF800000 : f32
    %3 = vector.broadcast %cst_2 : f32 to vector<8x128xf32>
    %c0_i32 = arith.constant 0 : i32
    %c8_i32 = arith.constant 8 : i32
    %4 = arith.muli %c0_i32, %c8_i32 : i32
    %5 = tpu.assume_multiple %4, 8 : i32
    %c0_3 = arith.constant 0 : index
    %6 = arith.index_cast %5 : i32 to index
    %c0_4 = arith.constant 0 : index
    %7 = vector.load %arg3[%c0_3, %6, %c0_4] : memref<1x128x128xf32, #tpu.memory_space<vmem>>, vector<1x8x128xf32>
    %8 = vector.shape_cast %7 : vector<1x8x128xf32> to vector<8x128xf32>
    %9 = arith.addf %2, %8 : vector<8x128xf32>
    %10 = arith.maximumf %3, %8 : vector<8x128xf32>
    %c1_i32 = arith.constant 1 : i32
    %c8_i32_5 = arith.constant 8 : i32
    %11 = arith.muli %c1_i32, %c8_i32_5 : i32
    %12 = tpu.assume_multiple %11, 8 : i32
    %c0_6 = arith.constant 0 : index
    %13 = arith.index_cast %12 : i32 to index
    %c0_7 = arith.constant 0 : index
    %14 = vector.load %arg3[%c0_6, %13, %c0_7] : memref<1x128x128xf32, #tpu.memory_space<vmem>>, vector<1x8x128xf32>
    %15 = vector.shape_cast %14 : vector<1x8x128xf32> to vector<8x128xf32>
    %16 = arith.addf %9, %15 : vector<8x128xf32>
    %17 = arith.maximumf %10, %15 : vector<8x128xf32>
    %c2_i32 = arith.constant 2 : i32
    %c8_i32_8 = arith.constant 8 : i32
    %18 = arith.muli %c2_i32, %c8_i32_8 : i32
    %19 = tpu.assume_multiple %18, 8 : i32
    %c0_9 = arith.constant 0 : index
    %20 = arith.index_cast %19 : i32 to index
    %c0_10 = arith.constant 0 : index
    %21 = vector.load %arg3[%c0_9, %20, %c0_10] : memref<1x128x128xf32, #tpu.memory_space<vmem>>, vector<1x8x128xf32>
    %22 = vector.shape_cast %21 : vector<1x8x128xf32> to vector<8x128xf32>
    %23 = arith.addf %16, %22 : vector<8x128xf32>
    %24 = arith.maximumf %17, %22 : vector<8x128xf32>
    %c3_i32 = arith.constant 3 : i32
    %c8_i32_11 = arith.constant 8 : i32
    %25 = arith.muli %c3_i32, %c8_i32_11 : i32
    %26 = tpu.assume_multiple %25, 8 : i32
    %c0_12 = arith.constant 0 : index
    %27 = arith.index_cast %26 : i32 to index
    %c0_13 = arith.constant 0 : index
    %28 = vector.load %arg3[%c0_12, %27, %c0_13] : memref<1x128x128xf32, #tpu.memory_space<vmem>>, vector<1x8x128xf32>
    %29 = vector.shape_cast %28 : vector<1x8x128xf32> to vector<8x128xf32>
    %30 = arith.addf %23, %29 : vector<8x128xf32>
    %31 = arith.maximumf %24, %29 : vector<8x128xf32>
    %c4_i32 = arith.constant 4 : i32
    %c8_i32_14 = arith.constant 8 : i32
    %32 = arith.muli %c4_i32, %c8_i32_14 : i32
    %33 = tpu.assume_multiple %32, 8 : i32
    %c0_15 = arith.constant 0 : index
    %34 = arith.index_cast %33 : i32 to index
    %c0_16 = arith.constant 0 : index
    %35 = vector.load %arg3[%c0_15, %34, %c0_16] : memref<1x128x128xf32, #tpu.memory_space<vmem>>, vector<1x8x128xf32>
    %36 = vector.shape_cast %35 : vector<1x8x128xf32> to vector<8x128xf32>
    %37 = arith.addf %30, %36 : vector<8x128xf32>
    %38 = arith.maximumf %31, %36 : vector<8x128xf32>
    %c5_i32 = arith.constant 5 : i32
    %c8_i32_17 = arith.constant 8 : i32
    %39 = arith.muli %c5_i32, %c8_i32_17 : i32
    %40 = tpu.assume_multiple %39, 8 : i32
    %c0_18 = arith.constant 0 : index
    %41 = arith.index_cast %40 : i32 to index
    %c0_19 = arith.constant 0 : index
    %42 = vector.load %arg3[%c0_18, %41, %c0_19] : memref<1x128x128xf32, #tpu.memory_space<vmem>>, vector<1x8x128xf32>
    %43 = vector.shape_cast %42 : vector<1x8x128xf32> to vector<8x128xf32>
    %44 = arith.addf %37, %43 : vector<8x128xf32>
    %45 = arith.maximumf %38, %43 : vector<8x128xf32>
    %c6_i32 = arith.constant 6 : i32
    %c8_i32_20 = arith.constant 8 : i32
    %46 = arith.muli %c6_i32, %c8_i32_20 : i32
    %47 = tpu.assume_multiple %46, 8 : i32
    %c0_21 = arith.constant 0 : index
    %48 = arith.index_cast %47 : i32 to index
    %c0_22 = arith.constant 0 : index
    %49 = vector.load %arg3[%c0_21, %48, %c0_22] : memref<1x128x128xf32, #tpu.memory_space<vmem>>, vector<1x8x128xf32>
    %50 = vector.shape_cast %49 : vector<1x8x128xf32> to vector<8x128xf32>
    %51 = arith.addf %44, %50 : vector<8x128xf32>
    %52 = arith.maximumf %45, %50 : vector<8x128xf32>
    %c7_i32 = arith.constant 7 : i32
    %c8_i32_23 = arith.constant 8 : i32
    %53 = arith.muli %c7_i32, %c8_i32_23 : i32
    %54 = tpu.assume_multiple %53, 8 : i32
    %c0_24 = arith.constant 0 : index
    %55 = arith.index_cast %54 : i32 to index
    %c0_25 = arith.constant 0 : index
    %56 = vector.load %arg3[%c0_24, %55, %c0_25] : memref<1x128x128xf32, #tpu.memory_space<vmem>>, vector<1x8x128xf32>
    %57 = vector.shape_cast %56 : vector<1x8x128xf32> to vector<8x128xf32>
    %58 = arith.addf %51, %57 : vector<8x128xf32>
    %59 = arith.maximumf %52, %57 : vector<8x128xf32>
    %c8_i32_26 = arith.constant 8 : i32
    %c8_i32_27 = arith.constant 8 : i32
    %60 = arith.muli %c8_i32_26, %c8_i32_27 : i32
    %61 = tpu.assume_multiple %60, 8 : i32
    %c0_28 = arith.constant 0 : index
    %62 = arith.index_cast %61 : i32 to index
    %c0_29 = arith.constant 0 : index
    %63 = vector.load %arg3[%c0_28, %62, %c0_29] : memref<1x128x128xf32, #tpu.memory_space<vmem>>, vector<1x8x128xf32>
    %64 = vector.shape_cast %63 : vector<1x8x128xf32> to vector<8x128xf32>
    %65 = arith.addf %58, %64 : vector<8x128xf32>
    %66 = arith.maximumf %59, %64 : vector<8x128xf32>
    %c9_i32 = arith.constant 9 : i32
    %c8_i32_30 = arith.constant 8 : i32
    %67 = arith.muli %c9_i32, %c8_i32_30 : i32
    %68 = tpu.assume_multiple %67, 8 : i32
    %c0_31 = arith.constant 0 : index
    %69 = arith.index_cast %68 : i32 to index
    %c0_32 = arith.constant 0 : index
    %70 = vector.load %arg3[%c0_31, %69, %c0_32] : memref<1x128x128xf32, #tpu.memory_space<vmem>>, vector<1x8x128xf32>
    %71 = vector.shape_cast %70 : vector<1x8x128xf32> to vector<8x128xf32>
    %72 = arith.addf %65, %71 : vector<8x128xf32>
    %73 = arith.maximumf %66, %71 : vector<8x128xf32>
    %c10_i32 = arith.constant 10 : i32
    %c8_i32_33 = arith.constant 8 : i32
    %74 = arith.muli %c10_i32, %c8_i32_33 : i32
    %75 = tpu.assume_multiple %74, 8 : i32
    %c0_34 = arith.constant 0 : index
    %76 = arith.index_cast %75 : i32 to index
    %c0_35 = arith.constant 0 : index
    %77 = vector.load %arg3[%c0_34, %76, %c0_35] : memref<1x128x128xf32, #tpu.memory_space<vmem>>, vector<1x8x128xf32>
    %78 = vector.shape_cast %77 : vector<1x8x128xf32> to vector<8x128xf32>
    %79 = arith.addf %72, %78 : vector<8x128xf32>
    %80 = arith.maximumf %73, %78 : vector<8x128xf32>
    %c11_i32 = arith.constant 11 : i32
    %c8_i32_36 = arith.constant 8 : i32
    %81 = arith.muli %c11_i32, %c8_i32_36 : i32
    %82 = tpu.assume_multiple %81, 8 : i32
    %c0_37 = arith.constant 0 : index
    %83 = arith.index_cast %82 : i32 to index
    %c0_38 = arith.constant 0 : index
    %84 = vector.load %arg3[%c0_37, %83, %c0_38] : memref<1x128x128xf32, #tpu.memory_space<vmem>>, vector<1x8x128xf32>
    %85 = vector.shape_cast %84 : vector<1x8x128xf32> to vector<8x128xf32>
    %86 = arith.addf %79, %85 : vector<8x128xf32>
    %87 = arith.maximumf %80, %85 : vector<8x128xf32>
    %c12_i32 = arith.constant 12 : i32
    %c8_i32_39 = arith.constant 8 : i32
    %88 = arith.muli %c12_i32, %c8_i32_39 : i32
    %89 = tpu.assume_multiple %88, 8 : i32
    %c0_40 = arith.constant 0 : index
    %90 = arith.index_cast %89 : i32 to index
    %c0_41 = arith.constant 0 : index
    %91 = vector.load %arg3[%c0_40, %90, %c0_41] : memref<1x128x128xf32, #tpu.memory_space<vmem>>, vector<1x8x128xf32>
    %92 = vector.shape_cast %91 : vector<1x8x128xf32> to vector<8x128xf32>
    %93 = arith.addf %86, %92 : vector<8x128xf32>
    %94 = arith.maximumf %87, %92 : vector<8x128xf32>
    %c13_i32 = arith.constant 13 : i32
    %c8_i32_42 = arith.constant 8 : i32
    %95 = arith.muli %c13_i32, %c8_i32_42 : i32
    %96 = tpu.assume_multiple %95, 8 : i32
    %c0_43 = arith.constant 0 : index
    %97 = arith.index_cast %96 : i32 to index
    %c0_44 = arith.constant 0 : index
    %98 = vector.load %arg3[%c0_43, %97, %c0_44] : memref<1x128x128xf32, #tpu.memory_space<vmem>>, vector<1x8x128xf32>
    %99 = vector.shape_cast %98 : vector<1x8x128xf32> to vector<8x128xf32>
    %100 = arith.addf %93, %99 : vector<8x128xf32>
    %101 = arith.maximumf %94, %99 : vector<8x128xf32>
    %c14_i32 = arith.constant 14 : i32
    %c8_i32_45 = arith.constant 8 : i32
    %102 = arith.muli %c14_i32, %c8_i32_45 : i32
    %103 = tpu.assume_multiple %102, 8 : i32
    %c0_46 = arith.constant 0 : index
    %104 = arith.index_cast %103 : i32 to index
    %c0_47 = arith.constant 0 : index
    %105 = vector.load %arg3[%c0_46, %104, %c0_47] : memref<1x128x128xf32, #tpu.memory_space<vmem>>, vector<1x8x128xf32>
    %106 = vector.shape_cast %105 : vector<1x8x128xf32> to vector<8x128xf32>
    %107 = arith.addf %100, %106 : vector<8x128xf32>
    %108 = arith.maximumf %101, %106 : vector<8x128xf32>
    %c15_i32 = arith.constant 15 : i32
    %c8_i32_48 = arith.constant 8 : i32
    %109 = arith.muli %c15_i32, %c8_i32_48 : i32
    %110 = tpu.assume_multiple %109, 8 : i32
    %c0_49 = arith.constant 0 : index
    %111 = arith.index_cast %110 : i32 to index
    %c0_50 = arith.constant 0 : index
    %112 = vector.load %arg3[%c0_49, %111, %c0_50] : memref<1x128x128xf32, #tpu.memory_space<vmem>>, vector<1x8x128xf32>
    %113 = vector.shape_cast %112 : vector<1x8x128xf32> to vector<8x128xf32>
    %114 = arith.addf %107, %113 : vector<8x128xf32>
    %115 = arith.maximumf %108, %113 : vector<8x128xf32>
    %c16_i32 = arith.constant 16 : i32
    %cst_51 = arith.constant dense<0.000000e+00> : vector<128xf32>
    %116 = vector.multi_reduction <add>, %114, %cst_51 [0] : vector<8x128xf32> to vector<128xf32>
    %117 = vector.shape_cast %116 : vector<128xf32> to vector<1x128xf32>
    %cst_52 = arith.constant dense<0.000000e+00> : vector<128xf32>
    %118 = vector.multi_reduction <add>, %1, %cst_52 [0] : vector<4x128xf32> to vector<128xf32>
    %119 = vector.shape_cast %118 : vector<128xf32> to vector<1x128xf32>
    %120 = arith.addf %117, %119 : vector<1x128xf32>
    %cst_53 = arith.constant dense<0xFF800000> : vector<128xf32>
    %121 = vector.multi_reduction <maximumf>, %115, %cst_53 [0] : vector<8x128xf32> to vector<128xf32>
    %122 = vector.shape_cast %121 : vector<128xf32> to vector<1x128xf32>
    %cst_54 = arith.constant dense<0xFF800000> : vector<128xf32>
    %123 = vector.multi_reduction <maximumf>, %1, %cst_54 [0] : vector<4x128xf32> to vector<128xf32>
    %124 = vector.shape_cast %123 : vector<128xf32> to vector<1x128xf32>
    %125 = arith.maximumf %122, %124 : vector<1x128xf32>
    %cst_55 = arith.constant 0.0075757578 : f32
    %126 = vector.broadcast %cst_55 : f32 to vector<1x128xf32>
    %127 = arith.mulf %120, %126 : vector<1x128xf32>
    %c0_56 = arith.constant 0 : index
    %c0_57 = arith.constant 0 : index
    %c0_58 = arith.constant 0 : index
    %128 = vector.load %arg4[%c0_56, %c0_57, %c0_58] : memref<1x2x128xf32, #tpu.memory_space<vmem>>, vector<1x1x128xf32>
    %129 = vector.shape_cast %128 : vector<1x1x128xf32> to vector<1x128xf32>
    %130 = vector.shape_cast %127 : vector<1x128xf32> to vector<1x1x128xf32>
    tpu.vector_store %arg4[%c0_56, %c0_57, %c0_58], %130 {strides = array<i32>} : memref<1x2x128xf32, #tpu.memory_space<vmem>>, vector<1x1x128xf32>,
    %c0_59 = arith.constant 0 : index
    %c1 = arith.constant 1 : index
    %c0_60 = arith.constant 0 : index
    %131 = vector.load %arg4[%c0_59, %c1, %c0_60] : memref<1x2x128xf32, #tpu.memory_space<vmem>>, vector<1x1x128xf32>
    %132 = vector.shape_cast %131 : vector<1x1x128xf32> to vector<1x128xf32>
    %133 = vector.shape_cast %125 : vector<1x128xf32> to vector<1x1x128xf32>
    tpu.vector_store %arg4[%c0_59, %c1, %c0_60], %133 {strides = array<i32>} : memref<1x2x128xf32, #tpu.memory_space<vmem>>, vector<1x1x128xf32>,
    return
  }
  func.func @transform_0(%arg0: i32, %arg1: i32) -> (i32, i32, i32) {
    %c0_i32 = arith.constant 0 : i32
    %c0_i32_0 = arith.constant 0 : i32
    return %arg0, %c0_i32, %arg1 : i32, i32, i32
  }
  func.func @transform_1(%arg0: i32, %arg1: i32) -> (i32, i32, i32) {
    %c0_i32 = arith.constant 0 : i32
    %c0_i32_0 = arith.constant 0 : i32
    return %arg0, %c0_i32, %arg1 : i32, i32, i32
  }
  func.func @transform_2(%arg0: i32, %arg1: i32) -> (i32, i32, i32) {
    %c0_i32 = arith.constant 0 : i32
    %c0_i32_0 = arith.constant 0 : i32
    return %arg0, %c0_i32, %arg1 : i32, i32, i32
  }
}

</mosaic_0001>

<llo_original>
// kernel: tpu_custom_call.1
$region0: #{tpu_custom_call.1}
  #allocation0 [shape = 'u32[]', space=smem, size = 0x4, offset = 0x4, fixed_abs, tag = 'smem constant byte address 0x4 - core index']
  #allocation1 [shape = 'u32[144,128]{1,0:T(1,128)}', space=vmem, size = 0x12000, scoped, tag = 'internal scratch']
  %s0 = inlined_call_operand.hbm [shape: f32[2,4,256], index: 0, kind: input, shape index: {}]
  %s1 = inlined_call_operand.hbm [shape: f32[2,128,256], index: 1, kind: input, shape index: {}]
  %s2 = inlined_call_operand.hbm [shape: f32[2,2,256], index: 2, kind: output, shape index: {}]
  %s3 = sld [smem:[#allocation0]]
  $region49: #{tpu_custom_call.1} parent=0
    _
  %s5 = ssub.s32 1, %s3
  %s6 = scalar_select 0, %s5, %s3
  $region1: #{tpu_custom_call.1} parent=0
    #allocation2 [shape = 'u8[4096]{0}', space=vmem, size = 0x1000, scoped, tag = 'input window, operand 0']
    #allocation3 [shape = 's32[2]{0}', space=sflag, size = 0x8, scoped, tag = 'scoped memory for tpu_custom_call.1']
    #allocation4 [shape = 's32[2]{0}', space=sflag, size = 0x8, scoped, tag = 'scoped memory for tpu_custom_call.1']
    #allocation5 [shape = 'u8[131072]{0}', space=vmem, size = 0x20000, scoped, tag = 'input window, operand 1']
    #allocation6 [shape = 's32[2]{0}', space=sflag, size = 0x8, scoped, tag = 'scoped memory for tpu_custom_call.1']
    #allocation7 [shape = 'u8[2048]{0}', space=vmem, size = 0x800, scoped, tag = 'output window, operand 0']
    %7 = vsyncpa [#allocation3], 0
    %s8 = scalar_lea.sflag [#allocation3], 1
    %9 = vsyncpa %s8, 0
    %10 = vsyncpa [#allocation6], 0
    %s11 = scalar_lea.sflag [#allocation6], 1
    %12 = vsyncpa %s11, 0
    %13 = vsyncpa [#allocation4], 0
    %s14 = scalar_lea.sflag [#allocation4], 1
    %15 = vsyncpa %s14, 0
    loop: start=0, step=1, limit=6
    $region2: #{tpu_custom_call.1} parent=1 // loop_pre_header
      _
    $region3: #{tpu_custom_call.1} parent=1 // loop_header
      %s17 = sphi 0, %s21
      %p18 = scmp.ge.s32.totalorder %s17, 6
      %s24 = sphi 0, %s36
      %s25 = sphi 0, %s32
      %s26 = sphi 0, %s24
      %s27 = sphi 0, %s25
      %s28 = sphi 0, %s26
      %s29 = sphi 0, %s27
      %s41 = sphi 0, %s43
      %s44 = sphi 0, %s41
      %s45 = sphi 0, %s44
      %s61 = sphi 0, %s45
      %s69 = sphi 0, %s71
      %s72 = sphi 0, %s69
      %s73 = sphi 0, %s72
      %s89 = sphi 0, %s73
      %s97 = sphi 0, %s99
      %s100 = sphi 0, %s97
      %s101 = sphi 0, %s100
      %s117 = sphi 0, %s101
    $region4: #{tpu_custom_call.1} parent=1 // loop_header_branch
      %20 = sbr.rel (%p18) target = $region8
    $region5: #{tpu_custom_call.1} parent=1 // loop_body
      %s22 = ssub.s32 %s17, 1
      %s23 = ssub.s32 %s17, 2
      %s30 = sadd.s32 1, %s25
      %p31 = scmp.ge.s32.totalorder %s30, 2
      %s32 = scalar_select %p31, 0, %s30
      %s33 = sadd.s32 1, %s24
      %s34 = scalar_select %p31, %s33, %s24
      %p35 = scmp.ge.s32.totalorder %s34, 2
      %s36 = scalar_select %p35, 0, %s34
      %s37 = ssub.s32 %s24, %s36
      %s38 = ssub.s32 %s25, %s32
      %s39 = sor.u32 %s37, %s38
      %p40 = scmp.eq.s32.totalorder %s39, 0
      %s42 = sadd.s32 %s41, 1
      %s43 = scalar_select %p40, %s41, %s42
      %p46 = pneg %p40
      %p47 = scmp.eq.s32.totalorder %s17, 3
      %p48 = por %p46, %p47
      %p49 = scmp.ne.s32.totalorder %s41, %s44
      %p50 = scmp.eq.s32.totalorder %s17, 0
      %p51 = por %p49, %p50
      %p52 = scmp.ne.s32.totalorder %s41, %s44
      %p53 = scmp.eq.s32.totalorder %s22, 3
      %p54 = por %p52, %p53
      %p55 = scmp.ne.s32.totalorder %s44, %s45
      %p56 = scmp.eq.s32.totalorder %s22, 0
      %p57 = por %p55, %p56
      %p58 = scmp.ne.s32.totalorder %s44, %s45
      %p59 = scmp.eq.s32.totalorder %s23, 3
      %p60 = por %p58, %p59
      %p62 = scmp.ne.s32.totalorder %s45, %s61
      %p63 = scmp.eq.s32.totalorder %s23, 0
      %p64 = por %p62, %p63
      %s65 = ssub.s32 %s24, %s36
      %s66 = ssub.s32 %s25, %s32
      %s67 = sor.u32 %s65, %s66
      %p68 = scmp.eq.s32.totalorder %s67, 0
      %s70 = sadd.s32 %s69, 1
      %s71 = scalar_select %p68, %s69, %s70
      %p74 = pneg %p68
      %p75 = scmp.eq.s32.totalorder %s17, 3
      %p76 = por %p74, %p75
      %p77 = scmp.ne.s32.totalorder %s69, %s72
      %p78 = scmp.eq.s32.totalorder %s17, 0
      %p79 = por %p77, %p78
      %p80 = scmp.ne.s32.totalorder %s69, %s72
      %p81 = scmp.eq.s32.totalorder %s22, 3
      %p82 = por %p80, %p81
      %p83 = scmp.ne.s32.totalorder %s72, %s73
      %p84 = scmp.eq.s32.totalorder %s22, 0
      %p85 = por %p83, %p84
      %p86 = scmp.ne.s32.totalorder %s72, %s73
      %p87 = scmp.eq.s32.totalorder %s23, 3
      %p88 = por %p86, %p87
      %p90 = scmp.ne.s32.totalorder %s73, %s89
      %p91 = scmp.eq.s32.totalorder %s23, 0
      %p92 = por %p90, %p91
      %s93 = ssub.s32 %s24, %s36
      %s94 = ssub.s32 %s25, %s32
      %s95 = sor.u32 %s93, %s94
      %p96 = scmp.eq.s32.totalorder %s95, 0
      %s98 = sadd.s32 %s97, 1
      %s99 = scalar_select %p96, %s97, %s98
      %p102 = pneg %p96
      %p103 = scmp.eq.s32.totalorder %s17, 3
      %p104 = por %p102, %p103
      %p105 = scmp.ne.s32.totalorder %s97, %s100
      %p106 = scmp.eq.s32.totalorder %s17, 0
      %p107 = por %p105, %p106
      %p108 = scmp.ne.s32.totalorder %s97, %s100
      %p109 = scmp.eq.s32.totalorder %s22, 3
      %p110 = por %p108, %p109
      %p111 = scmp.ne.s32.totalorder %s100, %s101
      %p112 = scmp.eq.s32.totalorder %s22, 0
      %p113 = por %p111, %p112
      %p114 = scmp.ne.s32.totalorder %s100, %s101
      %p115 = scmp.eq.s32.totalorder %s23, 3
      %p116 = por %p114, %p115
      %p118 = scmp.ne.s32.totalorder %s101, %s117
      %p119 = scmp.eq.s32.totalorder %s23, 0
      %p120 = por %p118, %p119
      %p121 = scmp.le.s32.totalorder 1, %s17
      %p122 = scmp.lt.s32.totalorder %s17, 5
      %p123 = pnand %p121, %p122
      %p124 = pneg %p123
      // Predicated region
      $region9: #{tpu_custom_call.1} parent=5 // pred_check
        _
      $region10: #{tpu_custom_call.1} parent=5 // pred_check_branch
        %126 = sbr.rel (%p123) target = $region12
      $region11: #{tpu_custom_call.1} parent=5 // pred_region
        %s127 = ssub.s32 %s17, 1
      $region12: #{tpu_custom_call.1} parent=5 // pred_fallthru
        _
      %p128 = scmp.lt.s32.totalorder %s17, 4
      // Predicated region
      $region13: #{tpu_custom_call.1} parent=5 // pred_check
        %p129 = pneg %p128
      $region14: #{tpu_custom_call.1} parent=5 // pred_check_branch
        %131 = sbr.rel (%p129) target = $region16
      $region15: #{tpu_custom_call.1} parent=5 // pred_region
        // Predicated region
        $region17: #{tpu_custom_call.1} parent=15 // pred_check
          %p132 = pneg %p51
        $region18: #{tpu_custom_call.1} parent=15 // pred_check_branch
          %134 = sbr.rel (%p132) target = $region20
        $region19: #{tpu_custom_call.1} parent=15 // pred_region
          %s135 = sand.u32 %s41, 1
          %s136 = scalar_lea.sflag [#allocation3], %s135
          %s137 = sand.u32 %s41, 1
          %s138 = smul.addr %s137, 4
          %s139 = scalar_lea.vmem [#allocation2], %s138
          %s141 = ssub.s32 64, 64
          %142 = vsyncadd %s136, %s141
          %s143 = smul.addr %s24, 2
          %s144 = sadd.s32 %s25, %s143
          %s145 = smul.addr %s144, 64
          %s146 = scalar_lea.hbm %s0, %s145
          %s148 = sshll.u32 %s139, 4
          %s149 = int_to_ptr.vmem [resolvable:$true] %s148
          %151 = dma.hbm_to_vmem [thread:$0]  %s146, 64, %s149, %s136
        $region20: #{tpu_custom_call.1} parent=15 // pred_fallthru
          _
        // Predicated region
        $region21: #{tpu_custom_call.1} parent=15 // pred_check
          %p152 = pneg %p79
        $region22: #{tpu_custom_call.1} parent=15 // pred_check_branch
          %154 = sbr.rel (%p152) target = $region24
        $region23: #{tpu_custom_call.1} parent=15 // pred_region
          %s155 = sand.u32 %s69, 1
          %s156 = scalar_lea.sflag [#allocation6], %s155
          %s157 = sand.u32 %s69, 1
          %s158 = smul.addr %s157, 128
          %s159 = scalar_lea.vmem [#allocation5], %s158
          %s161 = ssub.s32 2048, 2048
          %162 = vsyncadd %s156, %s161
          %s163 = smul.addr %s24, 32
          %s164 = sadd.s32 %s25, %s163
          %s165 = smul.addr %s164, 128
          %s166 = scalar_lea.hbm %s1, %s165
          %s167 = sshll.u32 %s159, 4
          %s168 = int_to_ptr.vmem [resolvable:$true] %s167
          %173 = dma.hbm_to_vmem [thread:$0]  %s166, 2048, %s168, %s156, 256, 128, 8
        $region24: #{tpu_custom_call.1} parent=15 // pred_fallthru
          _
      $region16: #{tpu_custom_call.1} parent=5 // pred_fallthru
        _
      %p174 = scmp.le.s32.totalorder 1, %s17
      %p175 = scmp.lt.s32.totalorder %s17, 5
      %p176 = pnand %p174, %p175
      %p177 = pneg %p176
      // Predicated region
      $region25: #{tpu_custom_call.1} parent=5 // pred_check
        _
      $region26: #{tpu_custom_call.1} parent=5 // pred_check_branch
        %179 = sbr.rel (%p176) target = $region28
      $region27: #{tpu_custom_call.1} parent=5 // pred_region
        %s180 = ssub.s32 %s17, 1
        %s181 = sand.u32 %s44, 1
        %s182 = scalar_lea.sflag [#allocation3], %s181
        %s183 = sand.u32 %s44, 1
        %s184 = smul.addr %s183, 4
        %s185 = scalar_lea.vmem [#allocation2], %s184
        // Predicated region
        $region29: #{tpu_custom_call.1} parent=27 // pred_check
          %p186 = pneg %p57
        $region30: #{tpu_custom_call.1} parent=27 // pred_check_branch
          %188 = sbr.rel (%p186) target = $region32
        $region31: #{tpu_custom_call.1} parent=27 // pred_region
          %189 = dma.done %s182, 64
        $region32: #{tpu_custom_call.1} parent=27 // pred_fallthru
          _
        %s190 = sand.u32 %s72, 1
        %s191 = scalar_lea.sflag [#allocation6], %s190
        %s192 = sand.u32 %s72, 1
        %s193 = smul.addr %s192, 128
        %s194 = scalar_lea.vmem [#allocation5], %s193
        // Predicated region
        $region33: #{tpu_custom_call.1} parent=27 // pred_check
          %p195 = pneg %p85
        $region34: #{tpu_custom_call.1} parent=27 // pred_check_branch
          %197 = sbr.rel (%p195) target = $region36
        $region35: #{tpu_custom_call.1} parent=27 // pred_region
          %198 = dma.done %s191, 2048
        $region36: #{tpu_custom_call.1} parent=27 // pred_fallthru
          _
        %s199 = sand.u32 %s44, 1
        %s200 = scalar_lea.sflag [#allocation3], %s199
        %s201 = sand.u32 %s44, 1
        %s202 = smul.addr %s201, 4
        %s203 = scalar_lea.vmem [#allocation2], %s202
        %p204 = pneg %p57
        %p205 = pneg %p54
        %s206 = sand.u32 %s72, 1
        %s207 = scalar_lea.sflag [#allocation6], %s206
        %s208 = sand.u32 %s72, 1
        %s209 = smul.addr %s208, 128
        %s210 = scalar_lea.vmem [#allocation5], %s209
        %p211 = pneg %p85
        %p212 = pneg %p82
        %p213 = pneg %p113
        %p214 = pneg %p110
        %s215 = sand.u32 %s100, 1
        %s216 = scalar_lea.sflag [#allocation4], %s215
        %s217 = sand.u32 %s100, 1
        %s218 = smul.addr %s217, 2
        %s219 = scalar_lea.vmem [#allocation7], %s218
        %v220 = vld [vmem:[%s185] sm:$0xf]
        %v221 = vld [vmem:[%s194] sm:$0xff]
        %v222 = vadd.f32 %v221, 0.0
        %s223 = scalar_lea.vmem %s194, 8 [#allocation5]
        %v224 = vld [vmem:[%s223] sm:$0xff]
        %v225 = vadd.f32 %v222, %v224
        %v226 = vmax.f32 %v221, %v224
        %s227 = scalar_lea.vmem %s194, 16 [#allocation5]
        %v228 = vld [vmem:[%s227] sm:$0xff]
        %v229 = vadd.f32 %v225, %v228
        %v230 = vmax.f32 %v226, %v228
        %s231 = scalar_lea.vmem %s194, 24 [#allocation5]
        %v232 = vld [vmem:[%s231] sm:$0xff]
        %v233 = vadd.f32 %v229, %v232
        %v234 = vmax.f32 %v230, %v232
        %s235 = scalar_lea.vmem %s194, 32 [#allocation5]
        %v236 = vld [vmem:[%s235] sm:$0xff]
        %v237 = vadd.f32 %v233, %v236
        %v238 = vmax.f32 %v234, %v236
        %s239 = scalar_lea.vmem %s194, 40 [#allocation5]
        %v240 = vld [vmem:[%s239] sm:$0xff]
        %v241 = vadd.f32 %v237, %v240
        %v242 = vmax.f32 %v238, %v240
        %s243 = scalar_lea.vmem %s194, 48 [#allocation5]
        %v244 = vld [vmem:[%s243] sm:$0xff]
        %v245 = vadd.f32 %v241, %v244
        %v246 = vmax.f32 %v242, %v244
        %s247 = scalar_lea.vmem %s194, 56 [#allocation5]
        %v248 = vld [vmem:[%s247] sm:$0xff]
        %v249 = vadd.f32 %v245, %v248
        %v250 = vmax.f32 %v246, %v248
        %s251 = scalar_lea.vmem %s194, 64 [#allocation5]
        %v252 = vld [vmem:[%s251] sm:$0xff]
        %v253 = vadd.f32 %v249, %v252
        %v254 = vmax.f32 %v250, %v252
        %s255 = scalar_lea.vmem %s194, 72 [#allocation5]
        %v256 = vld [vmem:[%s255] sm:$0xff]
        %v257 = vadd.f32 %v253, %v256
        %v258 = vmax.f32 %v254, %v256
        %s259 = scalar_lea.vmem %s194, 80 [#allocation5]
        %v260 = vld [vmem:[%s259] sm:$0xff]
        %v261 = vadd.f32 %v257, %v260
        %v262 = vmax.f32 %v258, %v260
        %s263 = scalar_lea.vmem %s194, 88 [#allocation5]
        %v264 = vld [vmem:[%s263] sm:$0xff]
        %v265 = vadd.f32 %v261, %v264
        %v266 = vmax.f32 %v262, %v264
        %s267 = scalar_lea.vmem %s194, 96 [#allocation5]
        %v268 = vld [vmem:[%s267] sm:$0xff]
        %v269 = vadd.f32 %v265, %v268
        %v270 = vmax.f32 %v266, %v268
        %s271 = scalar_lea.vmem %s194, 104 [#allocation5]
        %v272 = vld [vmem:[%s271] sm:$0xff]
        %v273 = vadd.f32 %v269, %v272
        %v274 = vmax.f32 %v270, %v272
        %s275 = scalar_lea.vmem %s194, 112 [#allocation5]
        %v276 = vld [vmem:[%s275] sm:$0xff]
        %v277 = vadd.f32 %v273, %v276
        %v278 = vmax.f32 %v274, %v276
        %s279 = scalar_lea.vmem %s194, 120 [#allocation5]
        %v280 = vld [vmem:[%s279] sm:$0xff]
        %v281 = vadd.f32 %v277, %v280
        %v282 = vmax.f32 %v278, %v280
        %v283 = vrot.slane %v281, 4
        %v284 = vadd.f32 %v281, %v283
        %v285 = vrot.slane %v284, 2
        %v286 = vadd.f32 %v284, %v285
        %v287 = vrot.slane %v286, 1
        %v288 = vadd.f32 %v286, %v287
        %vm289 = vcmask 1043456
        %v290 = vsel %vm289, %v220, 0.0
        %v291 = vrot.slane %v290, 4
        %v292 = vadd.f32 %v290, %v291
        %v293 = vrot.slane %v292, 2
        %v294 = vadd.f32 %v292, %v293
        %v295 = vrot.slane %v294, 1
        %v296 = vadd.f32 %v294, %v295
        %v297 = vadd.f32 %v288, %v296
        %v298 = vrot.slane %v282, 4
        %v299 = vmax.f32 %v282, %v298
        %v300 = vrot.slane %v299, 2
        %v301 = vmax.f32 %v299, %v300
        %v302 = vrot.slane %v301, 1
        %v303 = vmax.f32 %v301, %v302
        %v304 = vsel %vm289, %v220, -inf
        %v305 = vrot.slane %v304, 4
        %v306 = vmax.f32 %v304, %v305
        %v307 = vrot.slane %v306, 2
        %v308 = vmax.f32 %v306, %v307
        %v309 = vrot.slane %v308, 1
        %v310 = vmax.f32 %v308, %v309
        %v311 = vmax.f32 %v303, %v310
        %v312 = vmul.f32 %v297, 0.007575758
        %313 = vst [vmem:[%s219] sm:$0x1] %v312
        %314 = vst [vmem:[%s219 + $0x1] sm:$0x1] %v311
        %s315 = sand.u32 %s100, 1
        %s316 = scalar_lea.sflag [#allocation4], %s315
        %s317 = sand.u32 %s100, 1
        %s318 = smul.addr %s317, 2
        %s319 = scalar_lea.vmem [#allocation7], %s318
        // Predicated region
        $region37: #{tpu_custom_call.1} parent=27 // pred_check
          %p320 = pneg %p110
        $region38: #{tpu_custom_call.1} parent=27 // pred_check_branch
          %322 = sbr.rel (%p320) target = $region40
        $region39: #{tpu_custom_call.1} parent=27 // pred_region
          %s324 = ssub.s32 32, 32
          %325 = vsyncadd %s316, %s324
          %s326 = smul.addr %s26, 2
          %s327 = sadd.s32 %s27, %s326
          %s328 = smul.addr %s327, 32
          %s329 = scalar_lea.hbm %s2, %s328
          %s331 = sshll.u32 %s319, 4
          %s332 = int_to_ptr.vmem [resolvable:$true] %s331
          %334 = dma.vmem_to_hbm [thread:$0]  %s332, 32, %s329, %s316
        $region40: #{tpu_custom_call.1} parent=27 // pred_fallthru
          _
      $region28: #{tpu_custom_call.1} parent=5 // pred_fallthru
        _
      %p335 = scmp.le.s32.totalorder 2, %s17
      // Predicated region
      $region41: #{tpu_custom_call.1} parent=5 // pred_check
        %p336 = pneg %p335
      $region42: #{tpu_custom_call.1} parent=5 // pred_check_branch
        %338 = sbr.rel (%p336) target = $region44
      $region43: #{tpu_custom_call.1} parent=5 // pred_region
        %s339 = ssub.s32 %s17, 2
        // Predicated region
        $region45: #{tpu_custom_call.1} parent=43 // pred_check
          %p340 = pneg %p116
        $region46: #{tpu_custom_call.1} parent=43 // pred_check_branch
          %342 = sbr.rel (%p340) target = $region48
        $region47: #{tpu_custom_call.1} parent=43 // pred_region
          %s343 = sand.u32 %s101, 1
          %s344 = scalar_lea.sflag [#allocation4], %s343
          %s345 = sand.u32 %s101, 1
          %s346 = smul.addr %s345, 2
          %s347 = scalar_lea.vmem [#allocation7], %s346
          %348 = dma.done %s344, 32
        $region48: #{tpu_custom_call.1} parent=43 // pred_fallthru
          _
      $region44: #{tpu_custom_call.1} parent=5 // pred_fallthru
        _
    $region6: #{tpu_custom_call.1} parent=1 // loop_footer
      %s21 = sadd.s32 1, %s17
    $region7: #{tpu_custom_call.1} parent=1 // loop_footer_branch
      %16 = sbr.rel target = $region3
    $region8: #{tpu_custom_call.1} parent=1 // loop_exit
      _
    %349 = vsyncpa [#allocation3], 1
    %s350 = scalar_lea.sflag [#allocation3], 1
    %351 = vsyncpa %s350, 1
    %352 = vsyncpa [#allocation6], 1
    %s353 = scalar_lea.sflag [#allocation6], 1
    %354 = vsyncpa %s353, 1
    %355 = vsyncpa [#allocation4], 1
    %s356 = scalar_lea.sflag [#allocation4], 1
    %357 = vsyncpa %s356, 1

</llo_original>
